<compile_context>
chip_gen: v5e
topology: v5e:2x2
jax: 0.10.0
libtpu: 0.0.40
codegen_flags: <defaults>
</compile_context>

<pallas_src>
from functools import partial

import jax
import jax.numpy as jnp
from jax.experimental import pallas as pl
from jax.experimental.pallas import tpu as pltpu

KEYS = ("outcomes", "excl_criteria", "incl_criteria")  # columns / collectors
PAD = 128                                              # lane width of all slabs


def classification_kernel(z_ref, w_ref, v_ref, o_ref):
    """z_ref: [B, L, 128] pre-scaled activation slab (pooled segments + trial feats)
       w_ref: [256, 128]  rows 0:128 = folded first-layer weight A, rows 128:256 = W2 (padded)
       v_ref: [8, 128]    row0 = folded b1, row1 = gamma, row2 = beta, row3 = b2 (padded)
       o_ref: [B, 128]    lane-dense output slab (first O lanes valid)."""
    pad = z_ref.shape[-1]

    # SetEmbedding(mean) for all keys at once: the wrapper already multiplied by
    # mask / seq_len, so the masked mean is just a sum over the sequence axis.
    z = jnp.sum(z_ref[...], axis=1)                       # [B, 128]

    A = w_ref[:pad, :]                                    # [128, 128] folded linears
    W2 = w_ref[pad:, :]                                   # [128, 128] output linear (padded)
    b1 = v_ref[0:1, :]
    gamma = v_ref[1:2, :]
    beta = v_ref[2:3, :]
    b2 = v_ref[3:4, :]

    # Linear(inp_size -> hidden) with all small linears folded in: one K=128 matmul.
    y1 = jnp.dot(z.astype(A.dtype), A, preferred_element_type=jnp.float32) + b1

    # BatchNorm1d (training-mode batch stats, biased variance) + ReLU.
    mu = jnp.mean(y1, axis=0, keepdims=True)
    var = jnp.mean((y1 - mu) ** 2, axis=0, keepdims=True)
    yn = (y1 - mu) * jax.lax.rsqrt(var + 1e-5) * gamma + beta
    yr = jnp.maximum(yn, 0.0)

    # Linear(hidden -> out), lane-dense store.
    o_ref[...] = (jnp.dot(yr.astype(W2.dtype), W2,
                          preferred_element_type=jnp.float32) + b2).astype(o_ref.dtype)


def prepare_params(params, mxu_dtype=jnp.float32, pad=PAD):
    """One-time parameter preprocessing (hoisted out of the forward path).

    Folds the per-key SetEmbedding linears and trial_feats_proj into the first
    output_module linear and packs everything into two lane-dense slabs."""
    D = params["w1"].shape[0]          # hidden size
    K = len(KEYS)
    F = params["wtf"].shape[1]         # trial_feats size
    O = params["w2"].shape[0]          # out_channels
    assert K * D + F <= pad and D <= pad and O <= pad

    W1T = params["w1"].T               # [K*D + D, D]  (torch Linear stores [out, in])
    b_fold = params["b1"]
    A128 = jnp.zeros((pad, pad), jnp.float32)
    for k, key in enumerate(KEYS):
        W1_k = W1T[k * D:(k + 1) * D]                              # [D, D]
        A_k = params[f"col_{key}_w"].T @ W1_k                      # fold collector linear
        b_fold = b_fold + params[f"col_{key}_b"] @ W1_k
        A128 = A128.at[k * D:(k + 1) * D, :D].set(A_k)
    W1_tf = W1T[K * D:K * D + D]                                   # [D, D]
    A_tf = params["wtf"].T @ W1_tf                                 # fold trial_feats_proj
    b_fold = b_fold + params["btf"] @ W1_tf
    A128 = A128.at[K * D:K * D + F, :D].set(A_tf)

    W2_128 = jnp.zeros((pad, pad), jnp.float32).at[:D, :O].set(params["w2"].T)
    wslab = jnp.concatenate([A128, W2_128], axis=0).astype(mxu_dtype)  # [2*pad, pad]

    vec = jnp.zeros((8, pad), jnp.float32)
    vec = vec.at[0, :D].set(b_fold)
    vec = vec.at[1, :D].set(params["gamma"])
    vec = vec.at[2, :D].set(params["beta"])
    vec = vec.at[3, :O].set(params["b2"])

    return {"wslab": wslab, "vec": vec, "out_dim": O}


@partial(jax.jit, static_argnames=("out_dim",))
def classification_forward(embs, trial_data, wslab, vec, out_dim):
    """Glue (fused by XLA): gather node embeddings per key, pre-scale by
    mask/seq_len, pack into one lane-dense slab, then run the fused kernel."""
    D = embs.shape[1]
    K = len(KEYS)
    pad = wslab.shape[1]
    B, L = trial_data[KEYS[0]].shape
    F = trial_data["trial_feats"].shape[1]
    assert K * D + F <= pad

    parts = []
    for key in KEYS:
        data = trial_data[key]                                  # [B, L] int32, -1 = pad
        valid = data != -1
        idx = jnp.where(valid, data, 0)                         # data[mask] = 0
        h = embs[idx]                                           # gather -> [B, L, D]
        seq_len = jnp.maximum(valid.sum(axis=1), 1).astype(jnp.float32)
        scale = valid.astype(jnp.float32) / seq_len[:, None]    # mask * 1/seq_len
        parts.append(h * scale[..., None])                      # pre-scaled (fuses w/ gather)

    # trial_feats go into lanes [K*D : K*D+F] of sequence-row 0 (rest zero).
    rest = pad - K * D
    tf = trial_data["trial_feats"].astype(jnp.float32)
    tf_row = jnp.zeros((B, rest), jnp.float32).at[:, :F].set(tf)        # [B, rest]
    tf_block = jnp.concatenate(
        [tf_row[:, None, :], jnp.zeros((B, L - 1, rest), jnp.float32)], axis=1)
    slab = jnp.concatenate(parts + [tf_block], axis=-1)                 # [B, L, 128]

    out128 = pl.pallas_call(
        classification_kernel,
        out_shape=jax.ShapeDtypeStruct((B, pad), jnp.float32),
        in_specs=[pl.BlockSpec(memory_space=pltpu.MemorySpace.VMEM)] * 3,
        out_specs=pl.BlockSpec(memory_space=pltpu.MemorySpace.VMEM),
    )(slab, wslab, vec)
    return out128[:, :out_dim]


def reference_forward(embs, trial_data, params):
    """Pure-JAX mirror of the PyTorch forward for correctness check."""
    xs = []
    for k in KEYS:
        data = trial_data[k]
        padm = data == -1
        data = jnp.where(padm, 0, data)
        B, L = data.shape
        h = embs[data.reshape(-1)].reshape(B, L, -1)
        h = h * (~padm)[..., None].astype(h.dtype)
        seq_len = jnp.maximum((~padm).sum(axis=1), 1).astype(jnp.float32)
        pooled = h.sum(axis=1) / seq_len[:, None]
        xs.append(pooled @ params[f"col_{k}_w"].T + params[f"col_{k}_b"])
    x = jnp.concatenate(xs, axis=-1)
    trial_x = trial_data["trial_feats"] @ params["wtf"].T + params["btf"]
    x = jnp.concatenate([x, trial_x], axis=-1)
    y1 = x @ params["w1"].T + params["b1"]
    mu = y1.mean(axis=0, keepdims=True)
    var = ((y1 - mu) ** 2).mean(axis=0, keepdims=True)
    yn = (y1 - mu) / jnp.sqrt(var + 1e-5) * params["gamma"] + params["beta"]
    yr = jnp.maximum(yn, 0.0)
    return yr @ params["w2"].T + params["b2"]


def _linear_init(key, out_dim, in_dim):
    kw, kb = jax.random.split(key)
    bound = 1.0 / jnp.sqrt(jnp.float32(in_dim))
    w = jax.random.uniform(kw, (out_dim, in_dim), jnp.float32, -bound, bound)
    b = jax.random.uniform(kb, (out_dim,), jnp.float32, -bound, bound)
    return w, b


if __name__ == "__main__":
    # Small shapes consistent with the module's forward
    B, L, D, F, O, N = 8, 8, 32, 16, 8, 64   # batch, seq, hidden, trial_feats, out, num nodes
    K = len(KEYS)

    root = jax.random.PRNGKey(0)
    keys = jax.random.split(root, 16)

    # Precomputed node embeddings (output of encode())
    embs = jax.random.normal(keys[0], (N, D), jnp.float32)

    # trial_data: per-key index sequences padded with -1, plus trial_feats
    def make_seq(k):
        k1, k2 = jax.random.split(k)
        data = jax.random.randint(k1, (B, L), 0, N, dtype=jnp.int32)
        lens = jax.random.randint(k2, (B,), 1, L + 1, dtype=jnp.int32)
        pos = jnp.arange(L, dtype=jnp.int32)[None, :]
        return jnp.where(pos < lens[:, None], data, -1)

    trial_data = {k: make_seq(keys[1 + i]) for i, k in enumerate(KEYS)}
    trial_data["trial_feats"] = jax.random.normal(keys[5], (B, F), jnp.float32)

    # Deterministic parameter init (torch nn.Linear-style uniform)
    params = {}
    for i, k in enumerate(KEYS):                         # SetEmbedding linears (D -> D)
        w, b = _linear_init(keys[6 + i], D, D)
        params[f"col_{k}_w"], params[f"col_{k}_b"] = w, b
    params["wtf"], params["btf"] = _linear_init(keys[9], D, F)           # trial_feats_proj
    inp_size = D * K + D                                                  # concat + trial feats
    params["w1"], params["b1"] = _linear_init(keys[10], D, inp_size)     # output_module[0]
    params["gamma"] = jnp.ones((D,), jnp.float32)                        # BatchNorm1d
    params["beta"] = jnp.zeros((D,), jnp.float32)
    params["w2"], params["b2"] = _linear_init(keys[11], O, D)            # output_module[3]

    # One-time parameter preprocessing (use mxu_dtype=jnp.bfloat16 on v6e/v7x).
    prepared = prepare_params(params, mxu_dtype=jnp.float32)

    out = classification_forward(embs, trial_data,
                                 prepared["wslab"], prepared["vec"],
                                 out_dim=prepared["out_dim"])
    out = jax.block_until_ready(out)

    ref = reference_forward(embs, trial_data, params)
    assert out.shape == (B, O)
    assert jnp.allclose(out, ref, rtol=1e-4, atol=1e-4), (
        f"max abs err {jnp.max(jnp.abs(out - ref))}")
    print("KERNEL_OK")
</pallas_src>

<mosaic_0001>
module attributes {stable_mosaic.version = 11 : i64} {
  func.func @classification_kernel(%arg0: memref<8x8x128xf32, #tpu.memory_space<vmem>>, %arg1: memref<256x128xf32, #tpu.memory_space<vmem>>, %arg2: memref<8x128xf32, #tpu.memory_space<vmem>>, %arg3: memref<8x128xf32, #tpu.memory_space<vmem>>) attributes {dimension_semantics = [], scalar_prefetch = 0 : i64, scratch_operands = 0 : i64, tpu.core_type = #tpu.core_type<tc>} {
    %c0 = arith.constant 0 : index
    %c0_0 = arith.constant 0 : index
    %c0_1 = arith.constant 0 : index
    %0 = vector.load %arg0[%c0, %c0_0, %c0_1] : memref<8x8x128xf32, #tpu.memory_space<vmem>>, vector<8x8x128xf32>
    %cst = arith.constant dense<0.000000e+00> : vector<8x128xf32>
    %1 = vector.multi_reduction <add>, %0, %cst [1] : vector<8x8x128xf32> to vector<8x128xf32>
    %c0_2 = arith.constant 0 : index
    %c0_3 = arith.constant 0 : index
    %2 = vector.load %arg1[%c0_2, %c0_3] : memref<256x128xf32, #tpu.memory_space<vmem>>, vector<128x128xf32>
    %c128 = arith.constant 128 : index
    %c0_4 = arith.constant 0 : index
    %3 = vector.load %arg1[%c128, %c0_4] : memref<256x128xf32, #tpu.memory_space<vmem>>, vector<128x128xf32>
    %c0_5 = arith.constant 0 : index
    %c0_6 = arith.constant 0 : index
    %4 = vector.load %arg2[%c0_5, %c0_6] : memref<8x128xf32, #tpu.memory_space<vmem>>, vector<1x128xf32>
    %c1 = arith.constant 1 : index
    %c0_7 = arith.constant 0 : index
    %5 = vector.load %arg2[%c1, %c0_7] : memref<8x128xf32, #tpu.memory_space<vmem>>, vector<1x128xf32>
    %c2 = arith.constant 2 : index
    %c0_8 = arith.constant 0 : index
    %6 = vector.load %arg2[%c2, %c0_8] : memref<8x128xf32, #tpu.memory_space<vmem>>, vector<1x128xf32>
    %c3 = arith.constant 3 : index
    %c0_9 = arith.constant 0 : index
    %7 = vector.load %arg2[%c3, %c0_9] : memref<8x128xf32, #tpu.memory_space<vmem>>, vector<1x128xf32>
    %cst_10 = arith.constant dense<0.000000e+00> : vector<8x128xf32>
    %8 = tpu.matmul %1, %2, %cst_10 {dimension_numbers = #tpu.dot_dimension_numbers<[1], [0], [0], [1], [0, 0, 1, 1], [], []>} : vector<8x128xf32>, vector<128x128xf32>, vector<8x128xf32> -> vector<8x128xf32>
    %9 = vector.broadcast %4 : vector<1x128xf32> to vector<8x128xf32>
    %10 = arith.addf %8, %9 : vector<8x128xf32>
    %cst_11 = arith.constant dense<0.000000e+00> : vector<128xf32>
    %11 = vector.multi_reduction <add>, %10, %cst_11 [0] : vector<8x128xf32> to vector<128xf32>
    %12 = vector.shape_cast %11 : vector<128xf32> to vector<1x128xf32>
    %cst_12 = arith.constant 8.000000e+00 : f32
    %13 = vector.broadcast %cst_12 : f32 to vector<1x128xf32>
    %14 = arith.divf %12, %13 : vector<1x128xf32>
    %15 = vector.broadcast %14 : vector<1x128xf32> to vector<8x128xf32>
    %16 = arith.subf %10, %15 : vector<8x128xf32>
    %17 = arith.mulf %16, %16 : vector<8x128xf32>
    %cst_13 = arith.constant dense<0.000000e+00> : vector<128xf32>
    %18 = vector.multi_reduction <add>, %17, %cst_13 [0] : vector<8x128xf32> to vector<128xf32>
    %19 = vector.shape_cast %18 : vector<128xf32> to vector<1x128xf32>
    %cst_14 = arith.constant 8.000000e+00 : f32
    %20 = vector.broadcast %cst_14 : f32 to vector<1x128xf32>
    %21 = arith.divf %19, %20 : vector<1x128xf32>
    %22 = vector.broadcast %14 : vector<1x128xf32> to vector<8x128xf32>
    %23 = arith.subf %10, %22 : vector<8x128xf32>
    %cst_15 = arith.constant 9.99999974E-6 : f32
    %24 = vector.broadcast %cst_15 : f32 to vector<1x128xf32>
    %25 = arith.addf %21, %24 : vector<1x128xf32>
    %26 = math.rsqrt %25 : vector<1x128xf32>
    %27 = vector.broadcast %26 : vector<1x128xf32> to vector<8x128xf32>
    %28 = arith.mulf %23, %27 : vector<8x128xf32>
    %29 = vector.broadcast %5 : vector<1x128xf32> to vector<8x128xf32>
    %30 = arith.mulf %28, %29 : vector<8x128xf32>
    %31 = vector.broadcast %6 : vector<1x128xf32> to vector<8x128xf32>
    %32 = arith.addf %30, %31 : vector<8x128xf32>
    %cst_16 = arith.constant 0.000000e+00 : f32
    %33 = vector.broadcast %cst_16 : f32 to vector<8x128xf32>
    %34 = arith.maximumf %32, %33 : vector<8x128xf32>
    %cst_17 = arith.constant dense<0.000000e+00> : vector<8x128xf32>
    %35 = tpu.matmul %34, %3, %cst_17 {dimension_numbers = #tpu.dot_dimension_numbers<[1], [0], [0], [1], [0, 0, 1, 1], [], []>} : vector<8x128xf32>, vector<128x128xf32>, vector<8x128xf32> -> vector<8x128xf32>
    %36 = vector.broadcast %7 : vector<1x128xf32> to vector<8x128xf32>
    %37 = arith.addf %35, %36 : vector<8x128xf32>
    %c0_18 = arith.constant 0 : index
    %c0_19 = arith.constant 0 : index
    %38 = vector.load %arg3[%c0_18, %c0_19] : memref<8x128xf32, #tpu.memory_space<vmem>>, vector<8x128xf32>
    tpu.vector_store %arg3[%c0_18, %c0_19], %37 {strides = array<i32>} : memref<8x128xf32, #tpu.memory_space<vmem>>, vector<8x128xf32>,
    return
  }
}

</mosaic_0001>

<llo_original>
// kernel: classification_forward.1
$region0: #{classification_forward.1}
  #allocation0 [shape = 'u32[]', space=smem, size = 0x4, offset = 0x4, fixed_abs, tag = 'smem constant byte address 0x4 - core index']
  #allocation1 [shape = 'u32[72,128]{1,0:T(1,128)}', space=vmem, size = 0x9000, scoped, tag = 'internal scratch']
  %s0 = inlined_call_operand.vmem [shape: f32[8,8,128], index: 0, kind: input, shape index: {}]
  %s1 = inlined_call_operand.vmem [shape: f32[256,128], index: 1, kind: input, shape index: {}]
  %s2 = inlined_call_operand.vmem [shape: f32[8,128], index: 2, kind: input, shape index: {}]
  %s3 = inlined_call_operand.hbm [shape: f32[8,128], index: 3, kind: output, shape index: {}]
  %s4 = sld [smem:[#allocation0]]
  $region22: #{classification_forward.1} parent=0
    _
  %s6 = ssub.s32 1, %s4
  %s7 = scalar_select 0, %s6, %s4
  $region1: #{classification_forward.1} parent=0
    #allocation2 [shape = 'u8[4096]{0}', space=vmem, size = 0x1000, scoped, tag = 'output window, operand 0, single buffered']
    #allocation3 [shape = 's32[1]{0}', space=sflag, size = 0x4, scoped, tag = 'scoped memory for classification_forward.1']
    %8 = vsyncpa [#allocation3], 0
    // Predicated region
    $region2: #{classification_forward.1} parent=1 // pred_check
      _
    $region3: #{classification_forward.1} parent=1 // pred_check_branch
      %10 = sbr.rel (0) target = $region5
    $region4: #{classification_forward.1} parent=1 // pred_region
      _
    $region5: #{classification_forward.1} parent=1 // pred_fallthru
      _
    // Predicated region
    $region6: #{classification_forward.1} parent=1 // pred_check
      _
    $region7: #{classification_forward.1} parent=1 // pred_check_branch
      %12 = sbr.rel (0) target = $region9
    $region8: #{classification_forward.1} parent=1 // pred_region
      _
    $region9: #{classification_forward.1} parent=1 // pred_fallthru
      _
    // Predicated region
    $region10: #{classification_forward.1} parent=1 // pred_check
      _
    $region11: #{classification_forward.1} parent=1 // pred_check_branch
      %14 = sbr.rel (0) target = $region13
    $region12: #{classification_forward.1} parent=1 // pred_region
      _
    $region13: #{classification_forward.1} parent=1 // pred_fallthru
      _
    %v15 = vld [vmem:[%s0] sm:$0xff]
    %v16 = vld [vmem:[%s0 + $0x8] sm:$0xff]
    %v17 = vld [vmem:[%s0 + $0x10] sm:$0xff]
    %v18 = vld [vmem:[%s0 + $0x18] sm:$0xff]
    %v19 = vld [vmem:[%s0 + $0x20] sm:$0xff]
    %v20 = vld [vmem:[%s0 + $0x28] sm:$0xff]
    %v21 = vld [vmem:[%s0 + $0x30] sm:$0xff]
    %v22 = vld [vmem:[%s0 + $0x38] sm:$0xff]
    %v23 = vrot.slane %v15, 4
    %v24 = vadd.f32 %v15, %v23
    %v25 = vrot.slane %v24, 2
    %v26 = vadd.f32 %v24, %v25
    %v27 = vrot.slane %v26, 1
    %v28 = vadd.f32 %v26, %v27
    %v29 = vrot.slane %v16, 4
    %v30 = vadd.f32 %v16, %v29
    %v31 = vrot.slane %v30, 2
    %v32 = vadd.f32 %v30, %v31
    %v33 = vrot.slane %v32, 1
    %v34 = vadd.f32 %v32, %v33
    %v35 = vrot.slane %v17, 4
    %v36 = vadd.f32 %v17, %v35
    %v37 = vrot.slane %v36, 2
    %v38 = vadd.f32 %v36, %v37
    %v39 = vrot.slane %v38, 1
    %v40 = vadd.f32 %v38, %v39
    %v41 = vrot.slane %v18, 4
    %v42 = vadd.f32 %v18, %v41
    %v43 = vrot.slane %v42, 2
    %v44 = vadd.f32 %v42, %v43
    %v45 = vrot.slane %v44, 1
    %v46 = vadd.f32 %v44, %v45
    %v47 = vrot.slane %v19, 4
    %v48 = vadd.f32 %v19, %v47
    %v49 = vrot.slane %v48, 2
    %v50 = vadd.f32 %v48, %v49
    %v51 = vrot.slane %v50, 1
    %v52 = vadd.f32 %v50, %v51
    %v53 = vrot.slane %v20, 4
    %v54 = vadd.f32 %v20, %v53
    %v55 = vrot.slane %v54, 2
    %v56 = vadd.f32 %v54, %v55
    %v57 = vrot.slane %v56, 1
    %v58 = vadd.f32 %v56, %v57
    %v59 = vrot.slane %v21, 4
    %v60 = vadd.f32 %v21, %v59
    %v61 = vrot.slane %v60, 2
    %v62 = vadd.f32 %v60, %v61
    %v63 = vrot.slane %v62, 1
    %v64 = vadd.f32 %v62, %v63
    %v65 = vrot.slane %v22, 4
    %v66 = vadd.f32 %v22, %v65
    %v67 = vrot.slane %v66, 2
    %v68 = vadd.f32 %v66, %v67
    %v69 = vrot.slane %v68, 1
    %v70 = vadd.f32 %v68, %v69
    %v71 = vld [vmem:[%s1] sm:$0xff]
    %v72 = vld [vmem:[%s1 + $0x8] sm:$0xff]
    %v73 = vld [vmem:[%s1 + $0x10] sm:$0xff]
    %v74 = vld [vmem:[%s1 + $0x18] sm:$0xff]
    %v75 = vld [vmem:[%s1 + $0x20] sm:$0xff]
    %v76 = vld [vmem:[%s1 + $0x28] sm:$0xff]
    %v77 = vld [vmem:[%s1 + $0x30] sm:$0xff]
    %v78 = vld [vmem:[%s1 + $0x38] sm:$0xff]
    %v79 = vld [vmem:[%s1 + $0x40] sm:$0xff]
    %v80 = vld [vmem:[%s1 + $0x48] sm:$0xff]
    %v81 = vld [vmem:[%s1 + $0x50] sm:$0xff]
    %v82 = vld [vmem:[%s1 + $0x58] sm:$0xff]
    %v83 = vld [vmem:[%s1 + $0x60] sm:$0xff]
    %v84 = vld [vmem:[%s1 + $0x68] sm:$0xff]
    %v85 = vld [vmem:[%s1 + $0x70] sm:$0xff]
    %v86 = vld [vmem:[%s1 + $0x78] sm:$0xff]
    %v87 = vld [vmem:[%s1 + $0x80] sm:$0xff]
    %v88 = vld [vmem:[%s1 + $0x88] sm:$0xff]
    %v89 = vld [vmem:[%s1 + $0x90] sm:$0xff]
    %v90 = vld [vmem:[%s1 + $0x98] sm:$0xff]
    %v91 = vld [vmem:[%s1 + $0xa0] sm:$0xff]
    %v92 = vld [vmem:[%s1 + $0xa8] sm:$0xff]
    %v93 = vld [vmem:[%s1 + $0xb0] sm:$0xff]
    %v94 = vld [vmem:[%s1 + $0xb8] sm:$0xff]
    %v95 = vld [vmem:[%s1 + $0xc0] sm:$0xff]
    %v96 = vld [vmem:[%s1 + $0xc8] sm:$0xff]
    %v97 = vld [vmem:[%s1 + $0xd0] sm:$0xff]
    %v98 = vld [vmem:[%s1 + $0xd8] sm:$0xff]
    %v99 = vld [vmem:[%s1 + $0xe0] sm:$0xff]
    %v100 = vld [vmem:[%s1 + $0xe8] sm:$0xff]
    %v101 = vld [vmem:[%s1 + $0xf0] sm:$0xff]
    %v102 = vld [vmem:[%s1 + $0xf8] sm:$0xff]
    %v103 = vld [vmem:[%s2] sm:$0x1]
    %v104 = vld [vmem:[%s2 + $0x1] sm:$0x1]
    %v105 = vld [vmem:[%s2 + $0x2] sm:$0x1]
    %v106 = vld [vmem:[%s2 + $0x3] sm:$0x1]
    %v107 = vperm.slane %v103, 0
    %vm116 = vcmask 1041409
    %v117 = vsel %vm116, %v34, %v28
    %vm118 = vcmask 1042434
    %v119 = vsel %vm118, %v40, %v117
    %vm120 = vcmask 1043459
    %v121 = vsel %vm120, %v46, %v119
    %vm122 = vcmask 1044484
    %v123 = vsel %vm122, %v52, %v121
    %vm124 = vcmask 1045509
    %v125 = vsel %vm124, %v58, %v123
    %vm126 = vcmask 1046534
    %v127 = vsel %vm126, %v64, %v125
    %vm128 = vcmask 1047559
    %v129 = vsel %vm128, %v70, %v127
    %131 = vmatpush.msra.mxu0 %v86
    %132 = vmatpush.msra.mxu0 %v85
    %133 = vmatpush.msra.mxu0 %v84
    %134 = vmatpush.msra.mxu0 %v83
    %135 = vmatpush.msra.mxu0 %v82
    %136 = vmatpush.msra.mxu0 %v81
    %137 = vmatpush.msra.mxu0 %v80
    %138 = vmatpush.msra.mxu0 %v79
    %139 = vmatpush.msra.mxu0 %v78
    %140 = vmatpush.msra.mxu0 %v77
    %141 = vmatpush.msra.mxu0 %v76
    %142 = vmatpush.msra.mxu0 %v75
    %143 = vmatpush.msra.mxu0 %v74
    %144 = vmatpush.msra.mxu0 %v73
    %145 = vmatpush.msra.mxu0 %v72
    %146 = vmatpush.msra.mxu0 %v71
    %147 = vmatmul.f32.gmra.mxu0 %v129
    %v148 = vpop.f32.mrf.mxu0
    %v149 = vadd.f32 %v107, %v148
    %150 = vdwg.mxu0
    %v151 = vrot.slane %v149, 4
    %v152 = vadd.f32 %v149, %v151
    %v153 = vrot.slane %v152, 2
    %v154 = vadd.f32 %v152, %v153
    %v155 = vrot.slane %v154, 1
    %v156 = vadd.f32 %v154, %v155
    %v157 = vrcp.pop 8.0
    %v158 = vmul.f32 8.0, %v157
    %v159 = vsub.f32 1.0, %v158
    %v160 = vmul.f32 %v157, %v159
    %v161 = vadd.f32 %v157, %v160
    %vm162 = vweird.f32 %v157
    %v163 = vsel %vm162, %v157, %v161
    %v164 = vmul.f32 %v156, %v163
    %v165 = vsub.f32 %v149, %v164
    %v166 = vmul.f32 %v165, %v165
    %v167 = vrot.slane %v166, 4
    %v168 = vadd.f32 %v166, %v167
    %v169 = vrot.slane %v168, 2
    %v170 = vadd.f32 %v168, %v169
    %v171 = vrot.slane %v170, 1
    %v172 = vadd.f32 %v170, %v171
    %v173 = vmul.f32 %v172, %v163
    %v174 = vadd.f32 %v173, 1e-05
    %v175 = vrsqrt.pop %v174
    %v176 = vmul.f32 %v175, %v174
    %v177 = vmul.f32 %v176, %v175
    %v178 = vmul.f32 0.5, %v177
    %v179 = vsub.f32 1.5, %v178
    %v180 = vmul.f32 %v175, %v179
    %vm181 = vweird.f32 %v174
    %vm182 = vweird.f32 %v175
    %vm183 = vmor %vm181, %vm182
    %v184 = vsel %vm183, %v175, %v180
    %v185 = vmul.f32 %v165, %v184
    %v186 = vperm.slane %v104, 0
    %v187 = vmul.f32 %v185, %v186
    %v188 = vperm.slane %v105, 0
    %v189 = vadd.f32 %v187, %v188
    %v190 = vmax.f32 %v189, 0.0
    %v191 = vperm.slane %v106, 0
    %192 = vmatpush.msra.mxu0 %v102
    %193 = vmatpush.msra.mxu0 %v101
    %194 = vmatpush.msra.mxu0 %v100
    %195 = vmatpush.msra.mxu0 %v99
    %196 = vmatpush.msra.mxu0 %v98
    %197 = vmatpush.msra.mxu0 %v97
    %198 = vmatpush.msra.mxu0 %v96
    %199 = vmatpush.msra.mxu0 %v95
    %200 = vmatpush.msra.mxu0 %v94
    %201 = vmatpush.msra.mxu0 %v93
    %202 = vmatpush.msra.mxu0 %v92
    %203 = vmatpush.msra.mxu0 %v91
    %204 = vmatpush.msra.mxu0 %v90
    %205 = vmatpush.msra.mxu0 %v89
    %206 = vmatpush.msra.mxu0 %v88
    %207 = vmatpush.msra.mxu0 %v87
    %208 = vmatmul.f32.gmra.mxu0 %v190
    %v209 = vpop.f32.mrf.mxu0
    %v210 = vadd.f32 %v191, %v209
    %211 = vdwg.mxu0
    %212 = vst [vmem:[#allocation2] sm:$0xff] %v210
    // Predicated region
    $region14: #{classification_forward.1} parent=1 // pred_check
      _
    $region15: #{classification_forward.1} parent=1 // pred_check_branch
      %214 = sbr.rel (0) target = $region17
    $region16: #{classification_forward.1} parent=1 // pred_region
      %216 = vsyncadd [#allocation3], 0
      %s218 = sshll.u32 [#allocation2], 4
      %s219 = int_to_ptr.vmem [resolvable:$true] %s218
      %s220 = sshll.u32 %s3, 4
      %s221 = int_to_ptr.hbm [resolvable:$true] %s220
      %223 = dma.vmem_to_hbm [thread:$0]  %s219, 128, %s221, [#allocation3]
    $region17: #{classification_forward.1} parent=1 // pred_fallthru
      _
    // Predicated region
    $region18: #{classification_forward.1} parent=1 // pred_check
      _
    $region19: #{classification_forward.1} parent=1 // pred_check_branch
      %225 = sbr.rel (0) target = $region21
    $region20: #{classification_forward.1} parent=1 // pred_region
      %227 = dma.done [#allocation3], 128
    $region21: #{classification_forward.1} parent=1 // pred_fallthru
      _
    %228 = vsyncpa [#allocation3], 1

</llo_original>
